<compile_context>
chip_gen: v5e
topology: v5e:2x2
jax: 0.10.0
libtpu: 0.0.40
codegen_flags: <defaults>
</compile_context>

<pallas_src>
import functools

import jax
import jax.numpy as jnp
from jax.experimental import pallas as pl
from jax.experimental.pallas import tpu as pltpu

BN_EPS = 1e-5
RESNET18_LAYERS = ((64, 64, 1), (64, 128, 2), (128, 256, 2), (256, 512, 2))


def _round_up(x, m):
    return (x + m - 1) // m * m


# ----------------------------- Pallas kernels ------------------------------

def _conv_bias_kernel(a_ref, b_ref, bias_ref, o_ref, *, relu):
    """Fused conv-as-matmul + folded-BN bias (+ ReLU) epilogue."""
    y = jnp.dot(a_ref[...], b_ref[...],
                preferred_element_type=jnp.float32) + bias_ref[...]
    if relu:
        y = jnp.maximum(y, 0.0)
    o_ref[...] = y


def _conv_bias_res_relu_kernel(a_ref, b_ref, bias_ref, r_ref, o_ref):
    """Fused conv-as-matmul + folded-BN bias + residual add + ReLU epilogue."""
    y = (jnp.dot(a_ref[...], b_ref[...], preferred_element_type=jnp.float32)
         + bias_ref[...] + r_ref[...])
    o_ref[...] = jnp.maximum(y, 0.0)


def pl_conv_mm(patches, w, bias, *, relu, residual=None):
    """(M,K)bf16 @ (K,N)bf16 + bias (+ residual) (+ ReLU) -> (M,N) f32."""
    M, K = patches.shape
    K2, N = w.shape
    assert K == K2
    a = patches if patches.dtype == jnp.bfloat16 else patches.astype(jnp.bfloat16)

    Mp = _round_up(M, 8)
    if Mp > 512:                      # big-M case: 512-row tiles, parallel grid
        Mp = _round_up(Mp, 512)
        tile_m = 512
    else:                             # one big tile (minimizes per-step overhead)
        tile_m = Mp
    if Mp != M:
        a = jnp.pad(a, ((0, Mp - M), (0, 0)))
        if residual is not None:
            residual = jnp.pad(residual, ((0, Mp - M), (0, 0)))

    in_specs = [pl.BlockSpec((tile_m, K), lambda i: (i, 0)),
                pl.BlockSpec((K, N), lambda i: (0, 0)),
                pl.BlockSpec((1, N), lambda i: (0, 0))]
    args = [a, w, bias]
    if residual is not None:
        in_specs.append(pl.BlockSpec((tile_m, N), lambda i: (i, 0)))
        args.append(residual)
        kernel = _conv_bias_res_relu_kernel
    else:
        kernel = functools.partial(_conv_bias_kernel, relu=relu)

    out = pl.pallas_call(
        kernel,
        out_shape=jax.ShapeDtypeStruct((Mp, N), jnp.float32),
        grid=(Mp // tile_m,),
        in_specs=in_specs,
        out_specs=pl.BlockSpec((tile_m, N), lambda i: (i, 0)),
        compiler_params=pltpu.CompilerParams(
            dimension_semantics=("parallel",)),
    )(*args)
    return out[:M]


def _matmul_bias_kernel(a_ref, b_ref, bias_ref, o_ref):
    o_ref[...] = (jnp.dot(a_ref[...], b_ref[...],
                          preferred_element_type=jnp.float32) + bias_ref[...])


def pl_linear(x, w, b):
    M, _ = x.shape
    _, N = w.shape
    return pl.pallas_call(
        _matmul_bias_kernel,
        out_shape=jax.ShapeDtypeStruct((M, N), jnp.float32),
    )(x, w, b)


def _maxpool_kernel(x_ref, o_ref):
    m = x_ref[0]
    for i in range(1, x_ref.shape[0]):
        m = jnp.maximum(m, x_ref[i])
    o_ref[...] = m


def pl_maxpool_windows(stacked):  # (9, M, C) -> (M, C)
    _, M, C = stacked.shape
    return pl.pallas_call(
        _maxpool_kernel,
        out_shape=jax.ShapeDtypeStruct((M, C), jnp.float32),
    )(stacked)


def _avgpool_kernel(x_ref, o_ref, *, inv_hw):
    o_ref[...] = jnp.sum(x_ref[...], axis=1) * inv_hw


def pl_global_avgpool(x_nhwc):  # AdaptiveAvgPool2d((1,1)) + flatten(1)
    N, H, W, C = x_nhwc.shape
    x3 = x_nhwc.reshape(N, H * W, C)
    return pl.pallas_call(
        functools.partial(_avgpool_kernel, inv_hw=1.0 / (H * W)),
        out_shape=jax.ShapeDtypeStruct((N, C), jnp.float32),
    )(x3)


# ------------------------------ JAX glue ops --------------------------------

def _im2col(x, kh, kw, stride, pad):
    N, H, W, C = x.shape
    Ho = (H + 2 * pad - kh) // stride + 1
    Wo = (W + 2 * pad - kw) // stride + 1
    xp = jnp.pad(x, ((0, 0), (pad, pad), (pad, pad), (0, 0)))
    cols = []
    for i in range(kh):
        for j in range(kw):
            cols.append(xp[:, i:i + stride * (Ho - 1) + 1:stride,
                           j:j + stride * (Wo - 1) + 1:stride, :])
    patches = jnp.concatenate(cols, axis=-1)  # (N, Ho, Wo, kh*kw*C)
    return patches.reshape(N * Ho * Wo, kh * kw * C), N, Ho, Wo


def conv2d_bn(x, cp, *, kh, kw, stride, pad, relu, residual=None):
    """Conv + folded BN (+ residual add) (+ ReLU), one fused pallas_call."""
    # bf16 patches halve the matmul DMA bytes; accumulation stays f32.
    patches, N, Ho, Wo = _im2col(x.astype(jnp.bfloat16), kh, kw, stride, pad)
    cout = cp['w'].shape[1]
    res2d = None
    if residual is not None:
        res2d = residual.reshape(N * Ho * Wo, cout)
    out = pl_conv_mm(patches, cp['w'], cp['b'], relu=relu, residual=res2d)
    return out.reshape(N, Ho, Wo, cout)


def maxpool3x3s2(x):
    N, H, W, C = x.shape
    pad = 1
    Ho = (H + 2 * pad - 3) // 2 + 1
    Wo = (W + 2 * pad - 3) // 2 + 1
    # pad with a large negative value (inputs are post-ReLU, so equivalent to -inf pads)
    xp = jnp.pad(x, ((0, 0), (pad, pad), (pad, pad), (0, 0)),
                 constant_values=-1e30)
    wins = [xp[:, i:i + 2 * (Ho - 1) + 1:2, j:j + 2 * (Wo - 1) + 1:2, :]
            for i in range(3) for j in range(3)]
    stacked = jnp.stack(wins, axis=0).reshape(9, N * Ho * Wo, C)
    return pl_maxpool_windows(stacked).reshape(N, Ho, Wo, C)


def basic_block(x, p, stride):
    identity = x
    if 'down' in p:
        identity = conv2d_bn(x, p['down'], kh=1, kw=1, stride=stride, pad=0,
                             relu=False)
    h = conv2d_bn(x, p['conv1'], kh=3, kw=3, stride=stride, pad=1, relu=True)
    # conv2 + bn2 + residual add + relu fused into one kernel.
    h = conv2d_bn(h, p['conv2'], kh=3, kw=3, stride=1, pad=1, relu=True,
                  residual=identity)
    return h


def resnet18_forward(x_nhwc, p):
    h = conv2d_bn(x_nhwc, p['stem'], kh=7, kw=7, stride=2, pad=3, relu=True)
    h = maxpool3x3s2(h)
    for li, (_, _, stride) in enumerate(RESNET18_LAYERS):  # layer1..layer4
        for bi in range(2):
            h = basic_block(h, p['layers'][li][bi], stride if bi == 0 else 1)
    return h  # (N, 1, 1, 512) for 32x32 inputs


def task_discriminator(feat, dp):
    # AdaptiveAvgPool2d((1,1)) + Flatten + permute already produced `feat` (N,512).
    # AdaptiveAvgPool1d(128) averages groups of 4 -> trivial reshape-mean.
    N, C = feat.shape
    pooled = feat.reshape(N, 128, C // 128).mean(axis=-1)    # (N, 128)
    return pl_linear(pooled, dp['w'], dp['b'])               # Linear(128, num_tasks)


# --------------------------- parameter construction -------------------------

def _conv_w(key, kh, kw, cin, cout):
    std = (2.0 / (kh * kw * cin)) ** 0.5
    return jax.random.normal(key, (kh, kw, cin, cout), jnp.float32) * std


def fold_bn_into_conv(w, gamma, beta, mean, var):
    """Eval-mode BN folded into conv: scale=gamma/sqrt(var+eps), shift=beta-mean*scale."""
    scale = gamma / jnp.sqrt(var + BN_EPS)
    shift = beta - mean * scale
    kh, kw, cin, cout = w.shape
    wf = (w * scale[None, None, None, :]).reshape(kh * kw * cin, cout)
    return {'w': wf.astype(jnp.bfloat16),
            'b': shift.reshape(1, cout).astype(jnp.float32)}


def _conv_bn_params(key, kh, kw, cin, cout):
    # default torch BN init: gamma=1, beta=0, running_mean=0, running_var=1
    w = _conv_w(key, kh, kw, cin, cout)
    ones = jnp.ones((cout,), jnp.float32)
    zeros = jnp.zeros((cout,), jnp.float32)
    return fold_bn_into_conv(w, ones, zeros, zeros, ones)


def init_resnet18(key):
    k = iter(jax.random.split(key, 32))
    p = {'stem': _conv_bn_params(next(k), 7, 7, 3, 64)}
    layers = []
    for cin, cout, stride in RESNET18_LAYERS:
        b0 = {'conv1': _conv_bn_params(next(k), 3, 3, cin, cout),
              'conv2': _conv_bn_params(next(k), 3, 3, cout, cout)}
        if stride != 1 or cin != cout:
            b0['down'] = _conv_bn_params(next(k), 1, 1, cin, cout)
        b1 = {'conv1': _conv_bn_params(next(k), 3, 3, cout, cout),
              'conv2': _conv_bn_params(next(k), 3, 3, cout, cout)}
        layers.append([b0, b1])
    p['layers'] = layers
    return p


def init_discriminator(key, num_tasks):
    k1, k2 = jax.random.split(key)
    w = jax.random.normal(k1, (128, num_tasks), jnp.float32) / (128.0 ** 0.5)
    b = jax.random.normal(k2, (1, num_tasks), jnp.float32) * 0.01
    return {'w': w, 'b': b}


def init_aspmtl(key, tasks):
    # note: the torch module deep-copies one resnet into every subnet; here we
    # use distinct deterministic keys per net so the outputs are non-degenerate.
    ks = jax.random.split(key, len(tasks) + 2)
    return {
        'subnets': {t: init_resnet18(ks[i]) for i, t in enumerate(tasks)},
        'share': init_resnet18(ks[len(tasks)]),
        'disc': init_discriminator(ks[len(tasks) + 1], len(tasks)),
    }


# ------------------------------- ASPMTL forward -----------------------------

def aspmtl_forward(params, tasks, inputs_nchw, beta=None):
    # `inputs` is a single tensor -> used for every task (as in the module), so
    # the shared backbone / discriminator are computed once and reused.
    # `beta` only matters for GradientReversal's backward; forward is identity.
    x = jnp.transpose(inputs_nchw, (0, 2, 3, 1)).astype(jnp.float32)  # NCHW->NHWC

    st = resnet18_forward(x, params['share'])           # share net: ONCE
    share_feat = pl_global_avgpool(st)                  # (N, 512)
    dis = task_discriminator(share_feat, params['disc'])

    subnes_out, share_out, dis_out = {}, {}, {}
    for t in tasks:
        xt = resnet18_forward(x, params['subnets'][t])  # per-task subnet
        subnes_out[t] = pl_global_avgpool(xt)
        share_out[t] = share_feat
        dis_out[t] = dis
    return subnes_out, share_out, dis_out


if __name__ == "__main__":
    tasks = ("task_a", "task_b")
    key = jax.random.PRNGKey(0)
    pkey, xkey = jax.random.split(key)
    params = init_aspmtl(pkey, tasks)
    # NCHW input like torch: batch=2, 3 channels, 32x32 spatial
    x = jax.random.normal(xkey, (2, 3, 32, 32), jnp.float32)

    subnes_out, share_out, dis_out = aspmtl_forward(params, tasks, x, beta=1.0)
    jax.block_until_ready((subnes_out, share_out, dis_out))

    for t in tasks:
        assert subnes_out[t].shape == (2, 512)
        assert share_out[t].shape == (2, 512)
        assert dis_out[t].shape == (2, len(tasks))
        assert bool(jnp.all(jnp.isfinite(subnes_out[t])))
        assert bool(jnp.all(jnp.isfinite(share_out[t])))
        assert bool(jnp.all(jnp.isfinite(dis_out[t])))
    print("KERNEL_OK")
</pallas_src>

<mosaic_0001>
module attributes {stable_mosaic.version = 11 : i64} {
  func.func @_conv_bias_kernel(%arg0: i32, %arg1: memref<512x147xbf16, #tpu.memory_space<vmem>>, %arg2: memref<147x64xbf16, #tpu.memory_space<vmem>>, %arg3: memref<1x64xf32, #tpu.memory_space<vmem>>, %arg4: memref<512x64xf32, #tpu.memory_space<vmem>>) attributes {dimension_semantics = [#tpu.dimension_semantics<parallel>], iteration_bounds = array<i64: 1>, scalar_prefetch = 0 : i64, scratch_operands = 0 : i64, tpu.core_type = #tpu.core_type<tc>, window_params = [{transform_indices = @transform_0, window_bounds = array<i64: 512, 147>}, {pipeline_mode = #tpu.pipeline_mode<synchronous>, transform_indices = @transform_1, window_bounds = array<i64: 147, 64>}, {pipeline_mode = #tpu.pipeline_mode<synchronous>, transform_indices = @transform_2, window_bounds = array<i64: 1, 64>}, {transform_indices = @transform_3, window_bounds = array<i64: 512, 64>}]} {
    %c0 = arith.constant 0 : index
    %c0_0 = arith.constant 0 : index
    %0 = vector.load %arg1[%c0, %c0_0] : memref<512x147xbf16, #tpu.memory_space<vmem>>, vector<512x147xbf16>
    %c0_1 = arith.constant 0 : index
    %c0_2 = arith.constant 0 : index
    %1 = vector.load %arg2[%c0_1, %c0_2] : memref<147x64xbf16, #tpu.memory_space<vmem>>, vector<147x64xbf16>
    %cst = arith.constant dense<0.000000e+00> : vector<512x64xf32>
    %2 = tpu.matmul %0, %1, %cst {dimension_numbers = #tpu.dot_dimension_numbers<[1], [0], [0], [1], [0, 0, 1, 1], [], []>} : vector<512x147xbf16>, vector<147x64xbf16>, vector<512x64xf32> -> vector<512x64xf32>
    %c0_3 = arith.constant 0 : index
    %c0_4 = arith.constant 0 : index
    %3 = vector.load %arg3[%c0_3, %c0_4] : memref<1x64xf32, #tpu.memory_space<vmem>>, vector<1x64xf32>
    %4 = vector.broadcast %3 : vector<1x64xf32> to vector<512x64xf32>
    %5 = arith.addf %2, %4 : vector<512x64xf32>
    %cst_5 = arith.constant 0.000000e+00 : f32
    %6 = vector.broadcast %cst_5 : f32 to vector<512x64xf32>
    %7 = arith.maximumf %5, %6 : vector<512x64xf32>
    %c0_6 = arith.constant 0 : index
    %c0_7 = arith.constant 0 : index
    %8 = vector.load %arg4[%c0_6, %c0_7] : memref<512x64xf32, #tpu.memory_space<vmem>>, vector<512x64xf32>
    tpu.vector_store %arg4[%c0_6, %c0_7], %7 {strides = array<i32>} : memref<512x64xf32, #tpu.memory_space<vmem>>, vector<512x64xf32>,
    return
  }
  func.func @transform_0(%arg0: i32) -> (i32, i32) {
    %c0_i32 = arith.constant 0 : i32
    %c0_i32_0 = arith.constant 0 : i32
    return %arg0, %c0_i32 : i32, i32
  }
  func.func @transform_1(%arg0: i32) -> (i32, i32) {
    %c0_i32 = arith.constant 0 : i32
    %c0_i32_0 = arith.constant 0 : i32
    %c0_i32_1 = arith.constant 0 : i32
    return %c0_i32, %c0_i32_0 : i32, i32
  }
  func.func @transform_2(%arg0: i32) -> (i32, i32) {
    %c0_i32 = arith.constant 0 : i32
    %c0_i32_0 = arith.constant 0 : i32
    %c0_i32_1 = arith.constant 0 : i32
    return %c0_i32, %c0_i32_0 : i32, i32
  }
  func.func @transform_3(%arg0: i32) -> (i32, i32) {
    %c0_i32 = arith.constant 0 : i32
    %c0_i32_0 = arith.constant 0 : i32
    return %arg0, %c0_i32 : i32, i32
  }
}

</mosaic_0001>

<llo_original>
// kernel: tpu_custom_call.1
$region0: #{tpu_custom_call.1}
  #allocation0 [shape = 'u32[]', space=smem, size = 0x4, offset = 0x4, fixed_abs, tag = 'smem constant byte address 0x4 - core index']
  #allocation1 [shape = 'u32[72,128]{1,0:T(1,128)}', space=vmem, size = 0x9000, scoped, tag = 'internal scratch']
  %s0 = inlined_call_operand.vmem [shape: bf16[512,147], index: 0, kind: input, shape index: {}]
  %s1 = inlined_call_operand.vmem [shape: bf16[147,64], index: 1, kind: input, shape index: {}]
  %s2 = inlined_call_operand.vmem [shape: f32[1,64], index: 2, kind: input, shape index: {}]
  %s3 = inlined_call_operand.vmem [shape: f32[512,64], index: 3, kind: output, shape index: {}]
  %s4 = sld [smem:[#allocation0]]
  $region22: #{tpu_custom_call.1} parent=0
    _
  %s6 = ssub.s32 1, %s4
  %s7 = scalar_select 0, %s6, %s4
  // Predicated region
  $region2: #{tpu_custom_call.1} parent=0 // pred_check
    _
  $region3: #{tpu_custom_call.1} parent=0 // pred_check_branch
    %9 = sbr.rel (0) target = $region5
  $region4: #{tpu_custom_call.1} parent=0 // pred_region
    _
  $region5: #{tpu_custom_call.1} parent=0 // pred_fallthru
    _
  // Predicated region
  $region6: #{tpu_custom_call.1} parent=0 // pred_check
    _
  $region7: #{tpu_custom_call.1} parent=0 // pred_check_branch
    %11 = sbr.rel (0) target = $region9
  $region8: #{tpu_custom_call.1} parent=0 // pred_region
    _
  $region9: #{tpu_custom_call.1} parent=0 // pred_fallthru
    _
  // Predicated region
  $region10: #{tpu_custom_call.1} parent=0 // pred_check
    _
  $region11: #{tpu_custom_call.1} parent=0 // pred_check_branch
    %13 = sbr.rel (0) target = $region13
  $region12: #{tpu_custom_call.1} parent=0 // pred_region
    _
  $region13: #{tpu_custom_call.1} parent=0 // pred_fallthru
    _
  %v15 = vld [vmem:[%s0] sm:$0xff]
  %v16 = vld [vmem:[%s0 + $0x8] sm:$0xff]
  %v17 = vld [vmem:[%s0 + $0x10] sm:$0xff]
  %v18 = vld [vmem:[%s0 + $0x18] sm:$0xff]
  %v19 = vld [vmem:[%s0 + $0x20] sm:$0xff]
  %v20 = vld [vmem:[%s0 + $0x28] sm:$0xff]
  %v21 = vld [vmem:[%s0 + $0x30] sm:$0xff]
  %v22 = vld [vmem:[%s0 + $0x38] sm:$0xff]
  %v23 = vld [vmem:[%s0 + $0x40] sm:$0xff]
  %v24 = vld [vmem:[%s0 + $0x48] sm:$0xff]
  %v25 = vld [vmem:[%s0 + $0x50] sm:$0xff]
  %v26 = vld [vmem:[%s0 + $0x58] sm:$0xff]
  %v27 = vld [vmem:[%s0 + $0x60] sm:$0xff]
  %v28 = vld [vmem:[%s0 + $0x68] sm:$0xff]
  %v29 = vld [vmem:[%s0 + $0x70] sm:$0xff]
  %v30 = vld [vmem:[%s0 + $0x78] sm:$0xff]
  %v31 = vld [vmem:[%s0 + $0x80] sm:$0xff]
  %v32 = vld [vmem:[%s0 + $0x88] sm:$0xff]
  %v33 = vld [vmem:[%s0 + $0x90] sm:$0xff]
  %v34 = vld [vmem:[%s0 + $0x98] sm:$0xff]
  %v35 = vld [vmem:[%s0 + $0xa0] sm:$0xff]
  %v36 = vld [vmem:[%s0 + $0xa8] sm:$0xff]
  %v37 = vld [vmem:[%s0 + $0xb0] sm:$0xff]
  %v38 = vld [vmem:[%s0 + $0xb8] sm:$0xff]
  %v39 = vld [vmem:[%s0 + $0xc0] sm:$0xff]
  %v40 = vld [vmem:[%s0 + $0xc8] sm:$0xff]
  %v41 = vld [vmem:[%s0 + $0xd0] sm:$0xff]
  %v42 = vld [vmem:[%s0 + $0xd8] sm:$0xff]
  %v43 = vld [vmem:[%s0 + $0xe0] sm:$0xff]
  %v44 = vld [vmem:[%s0 + $0xe8] sm:$0xff]
  %v45 = vld [vmem:[%s0 + $0xf0] sm:$0xff]
  %v46 = vld [vmem:[%s0 + $0xf8] sm:$0xff]
  %v47 = vld [vmem:[%s0 + $0x100] sm:$0xff]
  %v48 = vld [vmem:[%s0 + $0x108] sm:$0xff]
  %v49 = vld [vmem:[%s0 + $0x110] sm:$0xff]
  %v50 = vld [vmem:[%s0 + $0x118] sm:$0xff]
  %v51 = vld [vmem:[%s0 + $0x120] sm:$0xff]
  %v52 = vld [vmem:[%s0 + $0x128] sm:$0xff]
  %v53 = vld [vmem:[%s0 + $0x130] sm:$0xff]
  %v54 = vld [vmem:[%s0 + $0x138] sm:$0xff]
  %v55 = vld [vmem:[%s0 + $0x140] sm:$0xff]
  %v56 = vld [vmem:[%s0 + $0x148] sm:$0xff]
  %v57 = vld [vmem:[%s0 + $0x150] sm:$0xff]
  %v58 = vld [vmem:[%s0 + $0x158] sm:$0xff]
  %v59 = vld [vmem:[%s0 + $0x160] sm:$0xff]
  %v60 = vld [vmem:[%s0 + $0x168] sm:$0xff]
  %v61 = vld [vmem:[%s0 + $0x170] sm:$0xff]
  %v62 = vld [vmem:[%s0 + $0x178] sm:$0xff]
  %v63 = vld [vmem:[%s0 + $0x180] sm:$0xff]
  %v64 = vld [vmem:[%s0 + $0x188] sm:$0xff]
  %v65 = vld [vmem:[%s0 + $0x190] sm:$0xff]
  %v66 = vld [vmem:[%s0 + $0x198] sm:$0xff]
  %v67 = vld [vmem:[%s0 + $0x1a0] sm:$0xff]
  %v68 = vld [vmem:[%s0 + $0x1a8] sm:$0xff]
  %v69 = vld [vmem:[%s0 + $0x1b0] sm:$0xff]
  %v70 = vld [vmem:[%s0 + $0x1b8] sm:$0xff]
  %v71 = vld [vmem:[%s0 + $0x1c0] sm:$0xff]
  %v72 = vld [vmem:[%s0 + $0x1c8] sm:$0xff]
  %v73 = vld [vmem:[%s0 + $0x1d0] sm:$0xff]
  %v74 = vld [vmem:[%s0 + $0x1d8] sm:$0xff]
  %v75 = vld [vmem:[%s0 + $0x1e0] sm:$0xff]
  %v76 = vld [vmem:[%s0 + $0x1e8] sm:$0xff]
  %v77 = vld [vmem:[%s0 + $0x1f0] sm:$0xff]
  %v78 = vld [vmem:[%s0 + $0x1f8] sm:$0xff]
  %v79 = vld [vmem:[%s1] sm:$0xf]
  %v80 = vld [vmem:[%s1 + $0x4] sm:$0xf]
  %v81 = vld [vmem:[%s1 + $0x8] sm:$0xf]
  %v82 = vld [vmem:[%s1 + $0xc] sm:$0xf]
  %v83 = vld [vmem:[%s1 + $0x10] sm:$0xf]
  %v84 = vld [vmem:[%s1 + $0x14] sm:$0xf]
  %v85 = vld [vmem:[%s1 + $0x18] sm:$0xf]
  %v86 = vld [vmem:[%s1 + $0x1c] sm:$0xf]
  %v87 = vld [vmem:[%s1 + $0x20] sm:$0xf]
  %v88 = vld [vmem:[%s1 + $0x24] sm:$0xf]
  %v89 = vld [vmem:[%s1 + $0x28] sm:$0xf]
  %v90 = vld [vmem:[%s1 + $0x2c] sm:$0xf]
  %v91 = vld [vmem:[%s1 + $0x30] sm:$0xf]
  %v92 = vld [vmem:[%s1 + $0x34] sm:$0xf]
  %v93 = vld [vmem:[%s1 + $0x38] sm:$0xf]
  %v94 = vld [vmem:[%s1 + $0x3c] sm:$0xf]
  %v95 = vld [vmem:[%s1 + $0x40] sm:$0xf]
  %v96 = vld [vmem:[%s1 + $0x44] sm:$0xf]
  %v97 = vld [vmem:[%s1 + $0x48] sm:$0x3]
  %v98 = vld [vmem:[%s2] sm:$0x1]
  %v100 = vperm.slane %v98, 0
  %v166 = vunpack.c.l.b16 %v15
  %v167 = vunpack.c.h.b16 %v15
  %v168 = vunpack.c.l.b16 %v16
  %v169 = vunpack.c.h.b16 %v16
  %v170 = vunpack.c.l.b16 %v17
  %v171 = vunpack.c.h.b16 %v17
  %v172 = vunpack.c.l.b16 %v18
  %v173 = vunpack.c.h.b16 %v18
  %v174 = vunpack.c.l.b16 %v19
  %v175 = vunpack.c.h.b16 %v19
  %v176 = vunpack.c.l.b16 %v20
  %v177 = vunpack.c.h.b16 %v20
  %v178 = vunpack.c.l.b16 %v21
  %v179 = vunpack.c.h.b16 %v21
  %v180 = vunpack.c.l.b16 %v22
  %v181 = vunpack.c.h.b16 %v22
  %v182 = vunpack.c.l.b16 %v23
  %v183 = vunpack.c.h.b16 %v23
  %v184 = vunpack.c.l.b16 %v24
  %v185 = vunpack.c.h.b16 %v24
  %v186 = vunpack.c.l.b16 %v25
  %v187 = vunpack.c.h.b16 %v25
  %v188 = vunpack.c.l.b16 %v26
  %v189 = vunpack.c.h.b16 %v26
  %v190 = vunpack.c.l.b16 %v27
  %v191 = vunpack.c.h.b16 %v27
  %v192 = vunpack.c.l.b16 %v28
  %v193 = vunpack.c.h.b16 %v28
  %v194 = vunpack.c.l.b16 %v29
  %v195 = vunpack.c.h.b16 %v29
  %v196 = vunpack.c.l.b16 %v30
  %v197 = vunpack.c.h.b16 %v30
  %v198 = vunpack.c.l.b16 %v31
  %v199 = vunpack.c.h.b16 %v31
  %v200 = vunpack.c.l.b16 %v32
  %v201 = vunpack.c.h.b16 %v32
  %v202 = vunpack.c.l.b16 %v33
  %v203 = vunpack.c.h.b16 %v33
  %v204 = vunpack.c.l.b16 %v34
  %v205 = vunpack.c.h.b16 %v34
  %v206 = vunpack.c.l.b16 %v35
  %v207 = vunpack.c.h.b16 %v35
  %v208 = vunpack.c.l.b16 %v36
  %v209 = vunpack.c.h.b16 %v36
  %v210 = vunpack.c.l.b16 %v37
  %v211 = vunpack.c.h.b16 %v37
  %v212 = vunpack.c.l.b16 %v38
  %v213 = vunpack.c.h.b16 %v38
  %v214 = vunpack.c.l.b16 %v39
  %v215 = vunpack.c.h.b16 %v39
  %v216 = vunpack.c.l.b16 %v40
  %v217 = vunpack.c.h.b16 %v40
  %v218 = vunpack.c.l.b16 %v41
  %v219 = vunpack.c.h.b16 %v41
  %v220 = vunpack.c.l.b16 %v42
  %v221 = vunpack.c.h.b16 %v42
  %v222 = vunpack.c.l.b16 %v43
  %v223 = vunpack.c.h.b16 %v43
  %v224 = vunpack.c.l.b16 %v44
  %v225 = vunpack.c.h.b16 %v44
  %v226 = vunpack.c.l.b16 %v45
  %v227 = vunpack.c.h.b16 %v45
  %v228 = vunpack.c.l.b16 %v46
  %v229 = vunpack.c.h.b16 %v46
  %v230 = vunpack.c.l.b16 %v47
  %v231 = vunpack.c.h.b16 %v47
  %v232 = vunpack.c.l.b16 %v48
  %v233 = vunpack.c.h.b16 %v48
  %v234 = vunpack.c.l.b16 %v49
  %v235 = vunpack.c.h.b16 %v49
  %v236 = vunpack.c.l.b16 %v50
  %v237 = vunpack.c.h.b16 %v50
  %v238 = vunpack.c.l.b16 %v51
  %v239 = vunpack.c.h.b16 %v51
  %v240 = vunpack.c.l.b16 %v52
  %v241 = vunpack.c.h.b16 %v52
  %v242 = vunpack.c.l.b16 %v53
  %v243 = vunpack.c.h.b16 %v53
  %v244 = vunpack.c.l.b16 %v54
  %v245 = vunpack.c.h.b16 %v54
  %v246 = vunpack.c.l.b16 %v55
  %v247 = vunpack.c.h.b16 %v55
  %v248 = vunpack.c.l.b16 %v56
  %v249 = vunpack.c.h.b16 %v56
  %v250 = vunpack.c.l.b16 %v57
  %v251 = vunpack.c.h.b16 %v57
  %v252 = vunpack.c.l.b16 %v58
  %v253 = vunpack.c.h.b16 %v58
  %v254 = vunpack.c.l.b16 %v59
  %v255 = vunpack.c.h.b16 %v59
  %v256 = vunpack.c.l.b16 %v60
  %v257 = vunpack.c.h.b16 %v60
  %v258 = vunpack.c.l.b16 %v61
  %v259 = vunpack.c.h.b16 %v61
  %v260 = vunpack.c.l.b16 %v62
  %v261 = vunpack.c.h.b16 %v62
  %v262 = vunpack.c.l.b16 %v63
  %v263 = vunpack.c.h.b16 %v63
  %v264 = vunpack.c.l.b16 %v64
  %v265 = vunpack.c.h.b16 %v64
  %v266 = vunpack.c.l.b16 %v65
  %v267 = vunpack.c.h.b16 %v65
  %v268 = vunpack.c.l.b16 %v66
  %v269 = vunpack.c.h.b16 %v66
  %v270 = vunpack.c.l.b16 %v67
  %v271 = vunpack.c.h.b16 %v67
  %v272 = vunpack.c.l.b16 %v68
  %v273 = vunpack.c.h.b16 %v68
  %v274 = vunpack.c.l.b16 %v69
  %v275 = vunpack.c.h.b16 %v69
  %v276 = vunpack.c.l.b16 %v70
  %v277 = vunpack.c.h.b16 %v70
  %v278 = vunpack.c.l.b16 %v71
  %v279 = vunpack.c.h.b16 %v71
  %v280 = vunpack.c.l.b16 %v72
  %v281 = vunpack.c.h.b16 %v72
  %v282 = vunpack.c.l.b16 %v73
  %v283 = vunpack.c.h.b16 %v73
  %v284 = vunpack.c.l.b16 %v74
  %v285 = vunpack.c.h.b16 %v74
  %v286 = vunpack.c.l.b16 %v75
  %v287 = vunpack.c.h.b16 %v75
  %v288 = vunpack.c.l.b16 %v76
  %v289 = vunpack.c.h.b16 %v76
  %v290 = vunpack.c.l.b16 %v77
  %v291 = vunpack.c.h.b16 %v77
  %v292 = vunpack.c.l.b16 %v78
  %v293 = vunpack.c.h.b16 %v78
  %v294 = vpack.c.b16 %v168, %v166
  %v295 = vpack.c.b16 %v169, %v167
  %v296 = vpack.c.b16 %v172, %v170
  %v297 = vpack.c.b16 %v173, %v171
  %v298 = vpack.c.b16 %v176, %v174
  %v299 = vpack.c.b16 %v177, %v175
  %v300 = vpack.c.b16 %v180, %v178
  %v301 = vpack.c.b16 %v181, %v179
  %v302 = vpack.c.b16 %v184, %v182
  %v303 = vpack.c.b16 %v185, %v183
  %v304 = vpack.c.b16 %v188, %v186
  %v305 = vpack.c.b16 %v189, %v187
  %v306 = vpack.c.b16 %v192, %v190
  %v307 = vpack.c.b16 %v193, %v191
  %v308 = vpack.c.b16 %v196, %v194
  %v309 = vpack.c.b16 %v197, %v195
  %v310 = vpack.c.b16 %v200, %v198
  %v311 = vpack.c.b16 %v201, %v199
  %v312 = vpack.c.b16 %v204, %v202
  %v313 = vpack.c.b16 %v205, %v203
  %v314 = vpack.c.b16 %v208, %v206
  %v315 = vpack.c.b16 %v209, %v207
  %v316 = vpack.c.b16 %v212, %v210
  %v317 = vpack.c.b16 %v213, %v211
  %v318 = vpack.c.b16 %v216, %v214
  %v319 = vpack.c.b16 %v217, %v215
  %v320 = vpack.c.b16 %v220, %v218
  %v321 = vpack.c.b16 %v221, %v219
  %v322 = vpack.c.b16 %v224, %v222
  %v323 = vpack.c.b16 %v225, %v223
  %v324 = vpack.c.b16 %v228, %v226
  %v325 = vpack.c.b16 %v229, %v227
  %v326 = vpack.c.b16 %v232, %v230
  %v327 = vpack.c.b16 %v233, %v231
  %v328 = vpack.c.b16 %v236, %v234
  %v329 = vpack.c.b16 %v237, %v235
  %v330 = vpack.c.b16 %v240, %v238
  %v331 = vpack.c.b16 %v241, %v239
  %v332 = vpack.c.b16 %v244, %v242
  %v333 = vpack.c.b16 %v245, %v243
  %v334 = vpack.c.b16 %v248, %v246
  %v335 = vpack.c.b16 %v249, %v247
  %v336 = vpack.c.b16 %v252, %v250
  %v337 = vpack.c.b16 %v253, %v251
  %v338 = vpack.c.b16 %v256, %v254
  %v339 = vpack.c.b16 %v257, %v255
  %v340 = vpack.c.b16 %v260, %v258
  %v341 = vpack.c.b16 %v261, %v259
  %v342 = vpack.c.b16 %v264, %v262
  %v343 = vpack.c.b16 %v265, %v263
  %v344 = vpack.c.b16 %v268, %v266
  %v345 = vpack.c.b16 %v269, %v267
  %v346 = vpack.c.b16 %v272, %v270
  %v347 = vpack.c.b16 %v273, %v271
  %v348 = vpack.c.b16 %v276, %v274
  %v349 = vpack.c.b16 %v277, %v275
  %v350 = vpack.c.b16 %v280, %v278
  %v351 = vpack.c.b16 %v281, %v279
  %v352 = vpack.c.b16 %v284, %v282
  %v353 = vpack.c.b16 %v285, %v283
  %v354 = vpack.c.b16 %v288, %v286
  %v355 = vpack.c.b16 %v289, %v287
  %v356 = vpack.c.b16 %v292, %v290
  %v357 = vpack.c.b16 %v293, %v291
  %v409 = vunpack.c.l.b16 %v79
  %v410 = vunpack.c.l.b16 %v80
  %v411 = vunpack.c.l.b16 %v81
  %v412 = vunpack.c.l.b16 %v82
  %v413 = vunpack.c.l.b16 %v83
  %v414 = vunpack.c.l.b16 %v84
  %v415 = vunpack.c.l.b16 %v85
  %v416 = vunpack.c.l.b16 %v86
  %v417 = vunpack.c.l.b16 %v87
  %v418 = vunpack.c.l.b16 %v88
  %v419 = vunpack.c.l.b16 %v89
  %v420 = vunpack.c.l.b16 %v90
  %v421 = vunpack.c.l.b16 %v91
  %v422 = vunpack.c.l.b16 %v92
  %v423 = vunpack.c.l.b16 %v93
  %v424 = vunpack.c.l.b16 %v94
  %v425 = vunpack.c.l.b16 %v95
  %v426 = vunpack.c.l.b16 %v96
  %v427 = vunpack.c.l.b16 %v97
  %v428 = vpack.c.b16 %v410, %v409
  %v429 = vpack.c.b16 %v412, %v411
  %v430 = vpack.c.b16 %v414, %v413
  %v431 = vpack.c.b16 %v416, %v415
  %v432 = vpack.c.b16 %v418, %v417
  %v433 = vpack.c.b16 %v420, %v419
  %v434 = vpack.c.b16 %v422, %v421
  %v435 = vpack.c.b16 %v424, %v423
  %v436 = vpack.c.b16 %v426, %v425
  %v437 = vpack.c.b16 %v427, %v427
  %vm447 = vcmask 154624
  %v449 = vsel %vm447, %v295, 0
  %v452 = vsel %vm447, %v297, 0
  %v455 = vsel %vm447, %v299, 0
  %v458 = vsel %vm447, %v301, 0
  %v461 = vsel %vm447, %v303, 0
  %v464 = vsel %vm447, %v305, 0
  %v467 = vsel %vm447, %v307, 0
  %v470 = vsel %vm447, %v309, 0
  %v473 = vsel %vm447, %v311, 0
  %v476 = vsel %vm447, %v313, 0
  %v479 = vsel %vm447, %v315, 0
  %v482 = vsel %vm447, %v317, 0
  %v485 = vsel %vm447, %v319, 0
  %v488 = vsel %vm447, %v321, 0
  %v491 = vsel %vm447, %v323, 0
  %v494 = vsel %vm447, %v325, 0
  %v497 = vsel %vm447, %v327, 0
  %v500 = vsel %vm447, %v329, 0
  %v503 = vsel %vm447, %v331, 0
  %v506 = vsel %vm447, %v333, 0
  %v509 = vsel %vm447, %v335, 0
  %v512 = vsel %vm447, %v337, 0
  %v515 = vsel %vm447, %v339, 0
  %v518 = vsel %vm447, %v341, 0
  %v521 = vsel %vm447, %v343, 0
  %v524 = vsel %vm447, %v345, 0
  %v527 = vsel %vm447, %v347, 0
  %v530 = vsel %vm447, %v349, 0
  %v533 = vsel %vm447, %v351, 0
  %v536 = vsel %vm447, %v353, 0
  %v539 = vsel %vm447, %v355, 0
  %v542 = vsel %vm447, %v357, 0
  %vm544 = vcmask 1040384
  %vm545 = vcmask 1041408
  %v546 = vsel %vm544, 4294967295, 65535
  %v547 = vsel %vm545, %v546, 0
  %v549 = vand.u32 %v437, %v547
  %551 = vmatpush.bf16.msra.mxu0 %v435
  %552 = vmatpush.bf16.msra.mxu0 %v434
  %553 = vmatpush.bf16.msra.mxu0 %v433
  %554 = vmatpush.bf16.msra.mxu0 %v432
  %555 = vmatpush.bf16.msra.mxu0 %v431
  %556 = vmatpush.bf16.msra.mxu0 %v430
  %557 = vmatpush.bf16.msra.mxu0 %v429
  %558 = vmatpush.bf16.msra.mxu0 %v428
  %559 = vmatmul.bf16.gmra.mxu0 %v294
  %v560 = vpop.f32.mrf.mxu0
  %v561 = vadd.f32 %v100, %v560
  %v562 = vpop.f32.mrf.mxu0
  %v563 = vadd.f32 %v100, %v562
  %564 = vmatmul.bf16.gmra.mxu0 %v296
  %v565 = vpop.f32.mrf.mxu0
  %v566 = vadd.f32 %v100, %v565
  %v567 = vpop.f32.mrf.mxu0
  %v568 = vadd.f32 %v100, %v567
  %569 = vmatmul.bf16.gmra.mxu0 %v298
  %v570 = vpop.f32.mrf.mxu0
  %v571 = vadd.f32 %v100, %v570
  %v572 = vpop.f32.mrf.mxu0
  %v573 = vadd.f32 %v100, %v572
  %574 = vmatmul.bf16.gmra.mxu0 %v300
  %v575 = vpop.f32.mrf.mxu0
  %v576 = vadd.f32 %v100, %v575
  %v577 = vpop.f32.mrf.mxu0
  %v578 = vadd.f32 %v100, %v577
  %579 = vmatmul.bf16.gmra.mxu0 %v302
  %v580 = vpop.f32.mrf.mxu0
  %v581 = vadd.f32 %v100, %v580
  %v582 = vpop.f32.mrf.mxu0
  %v583 = vadd.f32 %v100, %v582
  %584 = vmatmul.bf16.gmra.mxu0 %v304
  %v585 = vpop.f32.mrf.mxu0
  %v586 = vadd.f32 %v100, %v585
  %v587 = vpop.f32.mrf.mxu0
  %v588 = vadd.f32 %v100, %v587
  %589 = vmatmul.bf16.gmra.mxu0 %v306
  %v590 = vpop.f32.mrf.mxu0
  %v591 = vadd.f32 %v100, %v590
  %v592 = vpop.f32.mrf.mxu0
  %v593 = vadd.f32 %v100, %v592
  %594 = vmatmul.bf16.gmra.mxu0 %v308
  %v595 = vpop.f32.mrf.mxu0
  %v596 = vadd.f32 %v100, %v595
  %v597 = vpop.f32.mrf.mxu0
  %v598 = vadd.f32 %v100, %v597
  %599 = vmatmul.bf16.gmra.mxu0 %v310
  %v600 = vpop.f32.mrf.mxu0
  %v601 = vadd.f32 %v100, %v600
  %v602 = vpop.f32.mrf.mxu0
  %v603 = vadd.f32 %v100, %v602
  %604 = vmatmul.bf16.gmra.mxu0 %v312
  %v605 = vpop.f32.mrf.mxu0
  %v606 = vadd.f32 %v100, %v605
  %v607 = vpop.f32.mrf.mxu0
  %v608 = vadd.f32 %v100, %v607
  %609 = vmatmul.bf16.gmra.mxu0 %v314
  %v610 = vpop.f32.mrf.mxu0
  %v611 = vadd.f32 %v100, %v610
  %v612 = vpop.f32.mrf.mxu0
  %v613 = vadd.f32 %v100, %v612
  %614 = vmatmul.bf16.gmra.mxu0 %v316
  %v615 = vpop.f32.mrf.mxu0
  %v616 = vadd.f32 %v100, %v615
  %v617 = vpop.f32.mrf.mxu0
  %v618 = vadd.f32 %v100, %v617
  %619 = vmatmul.bf16.gmra.mxu0 %v318
  %v620 = vpop.f32.mrf.mxu0
  %v621 = vadd.f32 %v100, %v620
  %v622 = vpop.f32.mrf.mxu0
  %v623 = vadd.f32 %v100, %v622
  %624 = vmatmul.bf16.gmra.mxu0 %v320
  %v625 = vpop.f32.mrf.mxu0
  %v626 = vadd.f32 %v100, %v625
  %v627 = vpop.f32.mrf.mxu0
  %v628 = vadd.f32 %v100, %v627
  %629 = vmatmul.bf16.gmra.mxu0 %v322
  %v630 = vpop.f32.mrf.mxu0
  %v631 = vadd.f32 %v100, %v630
  %v632 = vpop.f32.mrf.mxu0
  %v633 = vadd.f32 %v100, %v632
  %634 = vmatmul.bf16.gmra.mxu0 %v324
  %v635 = vpop.f32.mrf.mxu0
  %v636 = vadd.f32 %v100, %v635
  %v637 = vpop.f32.mrf.mxu0
  %v638 = vadd.f32 %v100, %v637
  %639 = vmatmul.bf16.gmra.mxu0 %v326
  %v640 = vpop.f32.mrf.mxu0
  %v641 = vadd.f32 %v100, %v640
  %v642 = vpop.f32.mrf.mxu0
  %v643 = vadd.f32 %v100, %v642
  %644 = vmatmul.bf16.gmra.mxu0 %v328
  %v645 = vpop.f32.mrf.mxu0
  %v646 = vadd.f32 %v100, %v645
  %v647 = vpop.f32.mrf.mxu0
  %v648 = vadd.f32 %v100, %v647
  %649 = vmatmul.bf16.gmra.mxu0 %v330
  %v650 = vpop.f32.mrf.mxu0
  %v651 = vadd.f32 %v100, %v650
  %v652 = vpop.f32.mrf.mxu0
  %v653 = vadd.f32 %v100, %v652
  %654 = vmatmul.bf16.gmra.mxu0 %v332
  %v655 = vpop.f32.mrf.mxu0
  %v656 = vadd.f32 %v100, %v655
  %v657 = vpop.f32.mrf.mxu0
  %v658 = vadd.f32 %v100, %v657
  %659 = vmatmul.bf16.gmra.mxu0 %v334
  %v660 = vpop.f32.mrf.mxu0
  %v661 = vadd.f32 %v100, %v660
  %v662 = vpop.f32.mrf.mxu0
  %v663 = vadd.f32 %v100, %v662
  %664 = vmatmul.bf16.gmra.mxu0 %v336
  %v665 = vpop.f32.mrf.mxu0
  %v666 = vadd.f32 %v100, %v665
  %v667 = vpop.f32.mrf.mxu0
  %v668 = vadd.f32 %v100, %v667
  %669 = vmatmul.bf16.gmra.mxu0 %v338
  %v670 = vpop.f32.mrf.mxu0
  %v671 = vadd.f32 %v100, %v670
  %v672 = vpop.f32.mrf.mxu0
  %v673 = vadd.f32 %v100, %v672
  %674 = vmatmul.bf16.gmra.mxu0 %v340
  %v675 = vpop.f32.mrf.mxu0
  %v676 = vadd.f32 %v100, %v675
  %v677 = vpop.f32.mrf.mxu0
  %v678 = vadd.f32 %v100, %v677
  %679 = vmatmul.bf16.gmra.mxu0 %v342
  %v680 = vpop.f32.mrf.mxu0
  %v681 = vadd.f32 %v100, %v680
  %v682 = vpop.f32.mrf.mxu0
  %v683 = vadd.f32 %v100, %v682
  %684 = vmatmul.bf16.gmra.mxu0 %v344
  %v685 = vpop.f32.mrf.mxu0
  %v686 = vadd.f32 %v100, %v685
  %v687 = vpop.f32.mrf.mxu0
  %v688 = vadd.f32 %v100, %v687
  %689 = vmatmul.bf16.gmra.mxu0 %v346
  %v690 = vpop.f32.mrf.mxu0
  %v691 = vadd.f32 %v100, %v690
  %v692 = vpop.f32.mrf.mxu0
  %v693 = vadd.f32 %v100, %v692
  %694 = vmatmul.bf16.gmra.mxu0 %v348
  %v695 = vpop.f32.mrf.mxu0
  %v696 = vadd.f32 %v100, %v695
  %v697 = vpop.f32.mrf.mxu0
  %v698 = vadd.f32 %v100, %v697
  %699 = vmatmul.bf16.gmra.mxu0 %v350
  %v700 = vpop.f32.mrf.mxu0
  %v701 = vadd.f32 %v100, %v700
  %v702 = vpop.f32.mrf.mxu0
  %v703 = vadd.f32 %v100, %v702
  %704 = vmatmul.bf16.gmra.mxu0 %v352
  %v705 = vpop.f32.mrf.mxu0
  %v706 = vadd.f32 %v100, %v705
  %v707 = vpop.f32.mrf.mxu0
  %v708 = vadd.f32 %v100, %v707
  %709 = vmatmul.bf16.gmra.mxu0 %v354
  %v710 = vpop.f32.mrf.mxu0
  %v711 = vadd.f32 %v100, %v710
  %v712 = vpop.f32.mrf.mxu0
  %v713 = vadd.f32 %v100, %v712
  %714 = vmatmul.bf16.gmra.mxu0 %v356
  %v715 = vpop.f32.mrf.mxu0
  %v716 = vadd.f32 %v100, %v715
  %v717 = vpop.f32.mrf.mxu0
  %v718 = vadd.f32 %v100, %v717
  %719 = vdwg.mxu0
  %720 = vmatpush.bf16.msra.mxu0 0
  %721 = vmatpush.bf16.msra.mxu0 0
  %722 = vmatpush.bf16.msra.mxu0 0
  %723 = vmatpush.bf16.msra.mxu0 0
  %724 = vmatpush.bf16.msra.mxu0 0
  %725 = vmatpush.bf16.msra.mxu0 0
  %726 = vmatpush.bf16.msra.mxu0 %v549
  %727 = vmatpush.bf16.msra.mxu0 %v436
  %728 = vmatmul.bf16.gmra.mxu0 %v449
  %v729 = vpop.f32.mrf.mxu0
  %v730 = vadd.f32 %v561, %v729
  %v731 = vpop.f32.mrf.mxu0
  %v732 = vadd.f32 %v563, %v731
  %733 = vmatmul.bf16.gmra.mxu0 %v452
  %v734 = vpop.f32.mrf.mxu0
  %v735 = vadd.f32 %v566, %v734
  %v736 = vpop.f32.mrf.mxu0
  %v737 = vadd.f32 %v568, %v736
  %738 = vmatmul.bf16.gmra.mxu0 %v455
  %v739 = vpop.f32.mrf.mxu0
  %v740 = vadd.f32 %v571, %v739
  %v741 = vpop.f32.mrf.mxu0
  %v742 = vadd.f32 %v573, %v741
  %743 = vmatmul.bf16.gmra.mxu0 %v458
  %v744 = vpop.f32.mrf.mxu0
  %v745 = vadd.f32 %v576, %v744
  %v746 = vpop.f32.mrf.mxu0
  %v747 = vadd.f32 %v578, %v746
  %748 = vmatmul.bf16.gmra.mxu0 %v461
  %v749 = vpop.f32.mrf.mxu0
  %v750 = vadd.f32 %v581, %v749
  %v751 = vpop.f32.mrf.mxu0
  %v752 = vadd.f32 %v583, %v751
  %753 = vmatmul.bf16.gmra.mxu0 %v464
  %v754 = vpop.f32.mrf.mxu0
  %v755 = vadd.f32 %v586, %v754
  %v756 = vpop.f32.mrf.mxu0
  %v757 = vadd.f32 %v588, %v756
  %758 = vmatmul.bf16.gmra.mxu0 %v467
  %v759 = vpop.f32.mrf.mxu0
  %v760 = vadd.f32 %v591, %v759
  %v761 = vpop.f32.mrf.mxu0
  %v762 = vadd.f32 %v593, %v761
  %763 = vmatmul.bf16.gmra.mxu0 %v470
  %v764 = vpop.f32.mrf.mxu0
  %v765 = vadd.f32 %v596, %v764
  %v766 = vpop.f32.mrf.mxu0
  %v767 = vadd.f32 %v598, %v766
  %768 = vmatmul.bf16.gmra.mxu0 %v473
  %v769 = vpop.f32.mrf.mxu0
  %v770 = vadd.f32 %v601, %v769
  %v771 = vpop.f32.mrf.mxu0
  %v772 = vadd.f32 %v603, %v771
  %773 = vmatmul.bf16.gmra.mxu0 %v476
  %v774 = vpop.f32.mrf.mxu0
  %v775 = vadd.f32 %v606, %v774
  %v776 = vpop.f32.mrf.mxu0
  %v777 = vadd.f32 %v608, %v776
  %778 = vmatmul.bf16.gmra.mxu0 %v479
  %v779 = vpop.f32.mrf.mxu0
  %v780 = vadd.f32 %v611, %v779
  %v781 = vpop.f32.mrf.mxu0
  %v782 = vadd.f32 %v613, %v781
  %783 = vmatmul.bf16.gmra.mxu0 %v482
  %v784 = vpop.f32.mrf.mxu0
  %v785 = vadd.f32 %v616, %v784
  %v786 = vpop.f32.mrf.mxu0
  %v787 = vadd.f32 %v618, %v786
  %788 = vmatmul.bf16.gmra.mxu0 %v485
  %v789 = vpop.f32.mrf.mxu0
  %v790 = vadd.f32 %v621, %v789
  %v791 = vpop.f32.mrf.mxu0
  %v792 = vadd.f32 %v623, %v791
  %793 = vmatmul.bf16.gmra.mxu0 %v488
  %v794 = vpop.f32.mrf.mxu0
  %v795 = vadd.f32 %v626, %v794
  %v796 = vpop.f32.mrf.mxu0
  %v797 = vadd.f32 %v628, %v796
  %798 = vmatmul.bf16.gmra.mxu0 %v491
  %v799 = vpop.f32.mrf.mxu0
  %v800 = vadd.f32 %v631, %v799
  %v801 = vpop.f32.mrf.mxu0
  %v802 = vadd.f32 %v633, %v801
  %803 = vmatmul.bf16.gmra.mxu0 %v494
  %v804 = vpop.f32.mrf.mxu0
  %v805 = vadd.f32 %v636, %v804
  %v806 = vpop.f32.mrf.mxu0
  %v807 = vadd.f32 %v638, %v806
  %808 = vmatmul.bf16.gmra.mxu0 %v497
  %v809 = vpop.f32.mrf.mxu0
  %v810 = vadd.f32 %v641, %v809
  %v811 = vpop.f32.mrf.mxu0
  %v812 = vadd.f32 %v643, %v811
  %813 = vmatmul.bf16.gmra.mxu0 %v500
  %v814 = vpop.f32.mrf.mxu0
  %v815 = vadd.f32 %v646, %v814
  %v816 = vpop.f32.mrf.mxu0
  %v817 = vadd.f32 %v648, %v816
  %818 = vmatmul.bf16.gmra.mxu0 %v503
  %v819 = vpop.f32.mrf.mxu0
  %v820 = vadd.f32 %v651, %v819
  %v821 = vpop.f32.mrf.mxu0
  %v822 = vadd.f32 %v653, %v821
  %823 = vmatmul.bf16.gmra.mxu0 %v506
  %v824 = vpop.f32.mrf.mxu0
  %v825 = vadd.f32 %v656, %v824
  %v826 = vpop.f32.mrf.mxu0
  %v827 = vadd.f32 %v658, %v826
  %828 = vmatmul.bf16.gmra.mxu0 %v509
  %v829 = vpop.f32.mrf.mxu0
  %v830 = vadd.f32 %v661, %v829
  %v831 = vpop.f32.mrf.mxu0
  %v832 = vadd.f32 %v663, %v831
  %833 = vmatmul.bf16.gmra.mxu0 %v512
  %v834 = vpop.f32.mrf.mxu0
  %v835 = vadd.f32 %v666, %v834
  %v836 = vpop.f32.mrf.mxu0
  %v837 = vadd.f32 %v668, %v836
  %838 = vmatmul.bf16.gmra.mxu0 %v515
  %v839 = vpop.f32.mrf.mxu0
  %v840 = vadd.f32 %v671, %v839
  %v841 = vpop.f32.mrf.mxu0
  %v842 = vadd.f32 %v673, %v841
  %843 = vmatmul.bf16.gmra.mxu0 %v518
  %v844 = vpop.f32.mrf.mxu0
  %v845 = vadd.f32 %v676, %v844
  %v846 = vpop.f32.mrf.mxu0
  %v847 = vadd.f32 %v678, %v846
  %848 = vmatmul.bf16.gmra.mxu0 %v521
  %v849 = vpop.f32.mrf.mxu0
  %v850 = vadd.f32 %v681, %v849
  %v851 = vpop.f32.mrf.mxu0
  %v852 = vadd.f32 %v683, %v851
  %853 = vmatmul.bf16.gmra.mxu0 %v524
  %v854 = vpop.f32.mrf.mxu0
  %v855 = vadd.f32 %v686, %v854
  %v856 = vpop.f32.mrf.mxu0
  %v857 = vadd.f32 %v688, %v856
  %858 = vmatmul.bf16.gmra.mxu0 %v527
  %v859 = vpop.f32.mrf.mxu0
  %v860 = vadd.f32 %v691, %v859
  %v861 = vpop.f32.mrf.mxu0
  %v862 = vadd.f32 %v693, %v861
  %863 = vmatmul.bf16.gmra.mxu0 %v530
  %v864 = vpop.f32.mrf.mxu0
  %v865 = vadd.f32 %v696, %v864
  %v866 = vpop.f32.mrf.mxu0
  %v867 = vadd.f32 %v698, %v866
  %868 = vmatmul.bf16.gmra.mxu0 %v533
  %v869 = vpop.f32.mrf.mxu0
  %v870 = vadd.f32 %v701, %v869
  %v871 = vpop.f32.mrf.mxu0
  %v872 = vadd.f32 %v703, %v871
  %873 = vmatmul.bf16.gmra.mxu0 %v536
  %v874 = vpop.f32.mrf.mxu0
  %v875 = vadd.f32 %v706, %v874
  %v876 = vpop.f32.mrf.mxu0
  %v877 = vadd.f32 %v708, %v876
  %878 = vmatmul.bf16.gmra.mxu0 %v539
  %v879 = vpop.f32.mrf.mxu0
  %v880 = vadd.f32 %v711, %v879
  %v881 = vpop.f32.mrf.mxu0
  %v882 = vadd.f32 %v713, %v881
  %883 = vmatmul.bf16.gmra.mxu0 %v542
  %v884 = vpop.f32.mrf.mxu0
  %v885 = vadd.f32 %v716, %v884
  %v886 = vpop.f32.mrf.mxu0
  %v887 = vadd.f32 %v718, %v886
  %888 = vdwg.mxu0
  %v889 = vmax.f32 %v730, 0.0
  %v890 = vmax.f32 %v732, 0.0
  %v891 = vmax.f32 %v735, 0.0
  %v892 = vmax.f32 %v737, 0.0
  %v893 = vmax.f32 %v740, 0.0
  %v894 = vmax.f32 %v742, 0.0
  %v895 = vmax.f32 %v745, 0.0
  %v896 = vmax.f32 %v747, 0.0
  %v897 = vmax.f32 %v750, 0.0
  %v898 = vmax.f32 %v752, 0.0
  %v899 = vmax.f32 %v755, 0.0
  %v900 = vmax.f32 %v757, 0.0
  %v901 = vmax.f32 %v760, 0.0
  %v902 = vmax.f32 %v762, 0.0
  %v903 = vmax.f32 %v765, 0.0
  %v904 = vmax.f32 %v767, 0.0
  %v905 = vmax.f32 %v770, 0.0
  %v906 = vmax.f32 %v772, 0.0
  %v907 = vmax.f32 %v775, 0.0
  %v908 = vmax.f32 %v777, 0.0
  %v909 = vmax.f32 %v780, 0.0
  %v910 = vmax.f32 %v782, 0.0
  %v911 = vmax.f32 %v785, 0.0
  %v912 = vmax.f32 %v787, 0.0
  %v913 = vmax.f32 %v790, 0.0
  %v914 = vmax.f32 %v792, 0.0
  %v915 = vmax.f32 %v795, 0.0
  %v916 = vmax.f32 %v797, 0.0
  %v917 = vmax.f32 %v800, 0.0
  %v918 = vmax.f32 %v802, 0.0
  %v919 = vmax.f32 %v805, 0.0
  %v920 = vmax.f32 %v807, 0.0
  %v921 = vmax.f32 %v810, 0.0
  %v922 = vmax.f32 %v812, 0.0
  %v923 = vmax.f32 %v815, 0.0
  %v924 = vmax.f32 %v817, 0.0
  %v925 = vmax.f32 %v820, 0.0
  %v926 = vmax.f32 %v822, 0.0
  %v927 = vmax.f32 %v825, 0.0
  %v928 = vmax.f32 %v827, 0.0
  %v929 = vmax.f32 %v830, 0.0
  %v930 = vmax.f32 %v832, 0.0
  %v931 = vmax.f32 %v835, 0.0
  %v932 = vmax.f32 %v837, 0.0
  %v933 = vmax.f32 %v840, 0.0
  %v934 = vmax.f32 %v842, 0.0
  %v935 = vmax.f32 %v845, 0.0
  %v936 = vmax.f32 %v847, 0.0
  %v937 = vmax.f32 %v850, 0.0
  %v938 = vmax.f32 %v852, 0.0
  %v939 = vmax.f32 %v855, 0.0
  %v940 = vmax.f32 %v857, 0.0
  %v941 = vmax.f32 %v860, 0.0
  %v942 = vmax.f32 %v862, 0.0
  %v943 = vmax.f32 %v865, 0.0
  %v944 = vmax.f32 %v867, 0.0
  %v945 = vmax.f32 %v870, 0.0
  %v946 = vmax.f32 %v872, 0.0
  %v947 = vmax.f32 %v875, 0.0
  %v948 = vmax.f32 %v877, 0.0
  %v949 = vmax.f32 %v880, 0.0
  %v950 = vmax.f32 %v882, 0.0
  %v951 = vmax.f32 %v885, 0.0
  %v952 = vmax.f32 %v887, 0.0
  %vm953 = vcmask 523264
  %954 = vst.msk [vmem:[%s3] sm:$0xff] %vm953, %v889
  %955 = vst.msk [vmem:[%s3 + $0x8] sm:$0xff] %vm953, %v890
  %956 = vst.msk [vmem:[%s3 + $0x10] sm:$0xff] %vm953, %v891
  %957 = vst.msk [vmem:[%s3 + $0x18] sm:$0xff] %vm953, %v892
  %958 = vst.msk [vmem:[%s3 + $0x20] sm:$0xff] %vm953, %v893
  %959 = vst.msk [vmem:[%s3 + $0x28] sm:$0xff] %vm953, %v894
  %960 = vst.msk [vmem:[%s3 + $0x30] sm:$0xff] %vm953, %v895
  %961 = vst.msk [vmem:[%s3 + $0x38] sm:$0xff] %vm953, %v896
  %962 = vst.msk [vmem:[%s3 + $0x40] sm:$0xff] %vm953, %v897
  %963 = vst.msk [vmem:[%s3 + $0x48] sm:$0xff] %vm953, %v898
  %964 = vst.msk [vmem:[%s3 + $0x50] sm:$0xff] %vm953, %v899
  %965 = vst.msk [vmem:[%s3 + $0x58] sm:$0xff] %vm953, %v900
  %966 = vst.msk [vmem:[%s3 + $0x60] sm:$0xff] %vm953, %v901
  %967 = vst.msk [vmem:[%s3 + $0x68] sm:$0xff] %vm953, %v902
  %968 = vst.msk [vmem:[%s3 + $0x70] sm:$0xff] %vm953, %v903
  %969 = vst.msk [vmem:[%s3 + $0x78] sm:$0xff] %vm953, %v904
  %970 = vst.msk [vmem:[%s3 + $0x80] sm:$0xff] %vm953, %v905
  %971 = vst.msk [vmem:[%s3 + $0x88] sm:$0xff] %vm953, %v906
  %972 = vst.msk [vmem:[%s3 + $0x90] sm:$0xff] %vm953, %v907
  %973 = vst.msk [vmem:[%s3 + $0x98] sm:$0xff] %vm953, %v908
  %974 = vst.msk [vmem:[%s3 + $0xa0] sm:$0xff] %vm953, %v909
  %975 = vst.msk [vmem:[%s3 + $0xa8] sm:$0xff] %vm953, %v910
  %976 = vst.msk [vmem:[%s3 + $0xb0] sm:$0xff] %vm953, %v911
  %977 = vst.msk [vmem:[%s3 + $0xb8] sm:$0xff] %vm953, %v912
  %978 = vst.msk [vmem:[%s3 + $0xc0] sm:$0xff] %vm953, %v913
  %979 = vst.msk [vmem:[%s3 + $0xc8] sm:$0xff] %vm953, %v914
  %980 = vst.msk [vmem:[%s3 + $0xd0] sm:$0xff] %vm953, %v915
  %981 = vst.msk [vmem:[%s3 + $0xd8] sm:$0xff] %vm953, %v916
  %982 = vst.msk [vmem:[%s3 + $0xe0] sm:$0xff] %vm953, %v917
  %983 = vst.msk [vmem:[%s3 + $0xe8] sm:$0xff] %vm953, %v918
  %984 = vst.msk [vmem:[%s3 + $0xf0] sm:$0xff] %vm953, %v919
  %985 = vst.msk [vmem:[%s3 + $0xf8] sm:$0xff] %vm953, %v920
  %986 = vst.msk [vmem:[%s3 + $0x100] sm:$0xff] %vm953, %v921
  %987 = vst.msk [vmem:[%s3 + $0x108] sm:$0xff] %vm953, %v922
  %988 = vst.msk [vmem:[%s3 + $0x110] sm:$0xff] %vm953, %v923
  %989 = vst.msk [vmem:[%s3 + $0x118] sm:$0xff] %vm953, %v924
  %990 = vst.msk [vmem:[%s3 + $0x120] sm:$0xff] %vm953, %v925
  %991 = vst.msk [vmem:[%s3 + $0x128] sm:$0xff] %vm953, %v926
  %992 = vst.msk [vmem:[%s3 + $0x130] sm:$0xff] %vm953, %v927
  %993 = vst.msk [vmem:[%s3 + $0x138] sm:$0xff] %vm953, %v928
  %994 = vst.msk [vmem:[%s3 + $0x140] sm:$0xff] %vm953, %v929
  %995 = vst.msk [vmem:[%s3 + $0x148] sm:$0xff] %vm953, %v930
  %996 = vst.msk [vmem:[%s3 + $0x150] sm:$0xff] %vm953, %v931
  %997 = vst.msk [vmem:[%s3 + $0x158] sm:$0xff] %vm953, %v932
  %998 = vst.msk [vmem:[%s3 + $0x160] sm:$0xff] %vm953, %v933
  %999 = vst.msk [vmem:[%s3 + $0x168] sm:$0xff] %vm953, %v934
  %1000 = vst.msk [vmem:[%s3 + $0x170] sm:$0xff] %vm953, %v935
  %1001 = vst.msk [vmem:[%s3 + $0x178] sm:$0xff] %vm953, %v936
  %1002 = vst.msk [vmem:[%s3 + $0x180] sm:$0xff] %vm953, %v937
  %1003 = vst.msk [vmem:[%s3 + $0x188] sm:$0xff] %vm953, %v938
  %1004 = vst.msk [vmem:[%s3 + $0x190] sm:$0xff] %vm953, %v939
  %1005 = vst.msk [vmem:[%s3 + $0x198] sm:$0xff] %vm953, %v940
  %1006 = vst.msk [vmem:[%s3 + $0x1a0] sm:$0xff] %vm953, %v941
  %1007 = vst.msk [vmem:[%s3 + $0x1a8] sm:$0xff] %vm953, %v942
  %1008 = vst.msk [vmem:[%s3 + $0x1b0] sm:$0xff] %vm953, %v943
  %1009 = vst.msk [vmem:[%s3 + $0x1b8] sm:$0xff] %vm953, %v944
  %1010 = vst.msk [vmem:[%s3 + $0x1c0] sm:$0xff] %vm953, %v945
  %1011 = vst.msk [vmem:[%s3 + $0x1c8] sm:$0xff] %vm953, %v946
  %1012 = vst.msk [vmem:[%s3 + $0x1d0] sm:$0xff] %vm953, %v947
  %1013 = vst.msk [vmem:[%s3 + $0x1d8] sm:$0xff] %vm953, %v948
  %1014 = vst.msk [vmem:[%s3 + $0x1e0] sm:$0xff] %vm953, %v949
  %1015 = vst.msk [vmem:[%s3 + $0x1e8] sm:$0xff] %vm953, %v950
  %1016 = vst.msk [vmem:[%s3 + $0x1f0] sm:$0xff] %vm953, %v951
  %1017 = vst.msk [vmem:[%s3 + $0x1f8] sm:$0xff] %vm953, %v952
  // Predicated region
  $region14: #{tpu_custom_call.1} parent=0 // pred_check
    _
  $region15: #{tpu_custom_call.1} parent=0 // pred_check_branch
    %1019 = sbr.rel (0) target = $region17
  $region16: #{tpu_custom_call.1} parent=0 // pred_region
    _
  $region17: #{tpu_custom_call.1} parent=0 // pred_fallthru
    _
  // Predicated region
  $region18: #{tpu_custom_call.1} parent=0 // pred_check
    _
  $region19: #{tpu_custom_call.1} parent=0 // pred_check_branch
    %1021 = sbr.rel (0) target = $region21
  $region20: #{tpu_custom_call.1} parent=0 // pred_region
    _
  $region21: #{tpu_custom_call.1} parent=0 // pred_fallthru
    _

</llo_original>
